<compile_context>
chip_gen: v7x
topology: tpu7x:2x2x1
jax: 0.10.0
libtpu: 0.0.40
codegen_flags: <defaults>
</compile_context>

<pallas_src>
import jax
import jax.numpy as jnp
from jax.experimental import pallas as pl
from jax.experimental.pallas import tpu as pltpu


def _round_up(x: int, m: int) -> int:
    return (x + m - 1) // m * m


def _default_vmem_limit_bytes() -> int:
    cap = None
    try:
        cap = getattr(pltpu.get_tpu_info(), "vmem_capacity_bytes", None)
    except Exception:
        cap = None
    if not cap:
        cap = 64 * 1024 * 1024        # conservative (v7x-sized) fallback
    return int(cap) * 7 // 8          # leave headroom for compiler scratch


def _num_tensorcores() -> int:
    try:
        kind = jax.devices()[0].device_kind.lower()
    except Exception:
        return 1
    # v4 / v5p (megacore) and v7x present 2 TensorCores behind one device.
    return 2 if any(t in kind for t in ("v4", "v5p", "v7")) else 1


def _choose_tiles(M, Hp, budget, tm_max, num_tc):
    """Pick (tm, tn, w1_bufs): row tile, W1^T column tile, W1 buffer count."""
    tm_hi = max(16, min(int(tm_max), _round_up(M, 8)))
    if num_tc >= 2 and M >= 512:
        # Keep >=2 row steps so both TensorCores get balanced work under
        # dimension_semantics=("parallel", ...).  Single-TC chips skip this.
        tm_hi = min(tm_hi, max(256, _round_up(pl.cdiv(M, 2), 256)))

    def vmem_bytes(tm, tn, w1_bufs):
        return (w1_bufs * Hp * tn * 2        # W1^T tiles (bf16)
                + w1_bufs * 2 * tn * 4       # b1 + w2 row tiles (f32)
                + 2 * tm * Hp * 4            # double-buffered f32 x tiles
                + tm * Hp * 2                # in-kernel bf16 copy of x tile
                + tm * tn * 4                # f32 h intermediate
                + 3 * tm * 4)                # output (x2 bufs) + accumulator

    def best_tm(tn, w1_bufs):
        tm = tm_hi
        while tm > 16 and vmem_bytes(tm, tn, w1_bufs) > budget:
            nxt = tm // 2
            tm = max(16, _round_up(nxt, 256) if nxt >= 256 else _round_up(nxt, 8))
        return tm

    # Prefer resident W1 (single N step, single-buffered).  Fall back to
    # streaming (Hp, tn) column tiles over a second grid axis when that would
    # force a tiny row tile (large H, especially on v7x's 64 MiB VMEM).
    choices = [(Hp, 1)] + [(tn, 2) for tn in (512, 256, 128)
                           if tn < Hp and Hp % tn == 0]
    fallback = None
    for tn, w1_bufs in choices:
        tm = best_tm(tn, w1_bufs)
        if vmem_bytes(tm, tn, w1_bufs) <= budget:
            if tm >= min(256, tm_hi):
                return tm, tn, w1_bufs
            if fallback is None or tm > fallback[0]:
                fallback = (tm, tn, w1_bufs)
    if fallback is None:                      # pathological H; smallest tiles
        fallback = (16, choices[-1][0], choices[-1][1])
    return fallback


def prepare_value_head_params(w1, b1, w2, b2):
    """One-time layout prep, hoisted out of the per-forward path.

    w1: (H, H), b1: (H,), w2: (1, H), b2: (1,) in PyTorch (out x in) layout.
    Returns padded / transposed / bf16-cast weights reusable across forwards.
    """
    H = w1.shape[1]
    Hp = _round_up(H, 128)
    pad = Hp - H
    w1_t = jnp.pad(jnp.asarray(w1, jnp.float32).T,
                   ((0, pad), (0, pad))).astype(jnp.bfloat16)        # (in, out)
    b1_r = jnp.pad(jnp.asarray(b1, jnp.float32), (0, pad)).reshape(1, Hp)
    w2_r = jnp.pad(jnp.asarray(w2, jnp.float32).reshape(-1), (0, pad)).reshape(1, Hp)
    b2_s = jnp.asarray(b2, jnp.float32).reshape(1)                   # SMEM scalar
    return dict(hidden_size=H, w1_t=w1_t, b1_row=b1_r, w2_row=w2_r, b2=b2_s)


def value_head_mlp_apply(hidden_states, params, max_value, *,
                         tm_max=512, vmem_limit_bytes=None):
    """ValueHeadMLP forward with pre-prepared params.  Returns (B, S) f32."""
    B, S, H = hidden_states.shape
    assert H == params["hidden_size"], "params were prepared for a different H"
    M = B * S
    Hp = params["w1_t"].shape[0]
    mv = float(max_value)

    if vmem_limit_bytes is None:
        vmem_limit_bytes = _default_vmem_limit_bytes()
    budget = int(0.85 * vmem_limit_bytes)
    tm, tn, _ = _choose_tiles(M, Hp, budget, tm_max, _num_tensorcores())
    grid_m = pl.cdiv(M, tm)
    grid_n = Hp // tn
    resident = grid_n == 1

    # x stays f32: lane-pad only when H isn't a multiple of 128; rows are never
    # padded (partial last block is fine: the math is row-independent and the
    # (M, 1) output only contains the M real rows).  The bf16 cast happens
    # inside the kernel (VPU slack) instead of an extra wrapper pass over HBM.
    x2d = hidden_states.reshape(M, H)
    if x2d.dtype != jnp.float32:
        x2d = x2d.astype(jnp.float32)
    if Hp != H:
        x2d = jnp.pad(x2d, ((0, 0), (0, Hp - H)))

    def kernel(x_ref, w1_ref, b1_ref, w2_ref, b2_ref, o_ref, acc_ref):
        # x_ref : (tm, Hp) f32        w1_ref: (Hp, tn) bf16
        # b1_ref: (1, tn)  f32        w2_ref: (1, tn)  f32
        # b2_ref: (1,) f32 in SMEM    o_ref : (tm, 1)  f32
        # acc_ref: (tm, 1) f32 VMEM scratch (logit accumulator over n tiles)
        n = pl.program_id(1)

        @pl.when(n == 0)
        def _init():
            acc_ref[...] = jnp.zeros_like(acc_ref)

        xb = x_ref[...].astype(jnp.bfloat16)                 # in-kernel cast
        h = jnp.dot(xb, w1_ref[...], preferred_element_type=jnp.float32)
        h = jnp.maximum(h + b1_ref[...], 0.0)                # bias + ReLU (f32)
        # Second Linear (out_features=1): VPU multiply + lane reduction instead
        # of an N=1 MXU matmul, accumulated over W1^T column tiles.
        acc_ref[...] += jnp.sum(h * w2_ref[...], axis=-1, keepdims=True)

        @pl.when(n == pl.num_programs(1) - 1)
        def _finalize():
            logit = acc_ref[...] + b2_ref[0]
            o_ref[...] = jax.nn.sigmoid(logit) * mv

    def run(single_buffer_consts):
        const_kw = ({"pipeline_mode": pl.Buffered(1)}
                    if single_buffer_consts else {})
        return pl.pallas_call(
            kernel,
            out_shape=jax.ShapeDtypeStruct((M, 1), jnp.float32),
            grid=(grid_m, grid_n),
            in_specs=[
                pl.BlockSpec((tm, Hp), lambda i, n: (i, 0)),              # x rows
                pl.BlockSpec((Hp, tn), lambda i, n: (0, n), **const_kw),  # W1^T
                pl.BlockSpec((1, tn), lambda i, n: (0, n), **const_kw),   # b1
                pl.BlockSpec((1, tn), lambda i, n: (0, n), **const_kw),   # w2 row
                pl.BlockSpec(memory_space=pltpu.MemorySpace.SMEM),        # b2
            ],
            out_specs=pl.BlockSpec((tm, 1), lambda i, n: (i, 0)),
            scratch_shapes=[pltpu.VMEM((tm, 1), jnp.float32)],
            compiler_params=pltpu.CompilerParams(
                dimension_semantics=("parallel", "arbitrary"),
                vmem_limit_bytes=int(vmem_limit_bytes),
            ),
        )(x2d, params["w1_t"], params["b1_row"], params["w2_row"], params["b2"])

    if resident:
        # Grid-invariant W1^T / b1 / w2: single-buffer them to halve the W1
        # VMEM footprint.  Fall back to default buffering if pipeline_mode /
        # pl.Buffered(1) is unavailable in this jax version.
        try:
            out = run(True)
        except Exception:
            out = run(False)
    else:
        out = run(False)   # streamed W1 column tiles want double buffering

    # .squeeze() in the reference removes the trailing size-1 dim -> (B, S)
    return out.reshape(B, S)


def value_head_mlp(hidden_states, w1, b1, w2, b2, max_value, **kwargs):
    """Convenience wrapper.  For repeated forwards, call
    prepare_value_head_params once and reuse it (avoids re-doing the W1
    transpose / pad / bf16 cast every call)."""
    params = prepare_value_head_params(w1, b1, w2, b2)
    return value_head_mlp_apply(hidden_states, params, max_value, **kwargs)


def reference_forward(hidden_states, w1, b1, w2, b2, max_value):
    """Pure-JAX f32 reference matching the PyTorch module (eval mode)."""
    x = hidden_states.astype(jnp.float32)
    h = jnp.maximum(x @ w1.T + b1, 0.0)
    o = h @ w2.T + b2
    return jax.nn.sigmoid(jnp.squeeze(o, axis=-1)) * max_value


def reference_forward_bf16(hidden_states, w1, b1, w2, b2, max_value):
    """Reference with the same bf16 quantization of x/W1 as the kernel."""
    B, S, H = hidden_states.shape
    x = hidden_states.reshape(-1, H).astype(jnp.bfloat16)
    h = jnp.dot(x, w1.T.astype(jnp.bfloat16), preferred_element_type=jnp.float32)
    h = jnp.maximum(h + b1.astype(jnp.float32), 0.0)
    o = h @ w2.reshape(-1).astype(jnp.float32) + b2.astype(jnp.float32)[0]
    return (jax.nn.sigmoid(o) * max_value).reshape(B, S)


if __name__ == "__main__":
    # Small, deterministic setup: batch=2, seq=8, hidden=32, max_value=5.0
    B, S, H = 2, 8, 32
    max_value = 5.0

    key = jax.random.PRNGKey(0)
    k_x, k_w1, k_b1, k_w2, k_b2 = jax.random.split(key, 5)

    hidden_states = jax.random.normal(k_x, (B, S, H), dtype=jnp.float32)
    # nn.Linear(hidden, hidden): weight (H, H), bias (H,)
    w1 = jax.random.normal(k_w1, (H, H), dtype=jnp.float32) * (1.0 / jnp.sqrt(H))
    b1 = jax.random.normal(k_b1, (H,), dtype=jnp.float32) * 0.01
    # nn.Linear(hidden, 1): weight (1, H), bias (1,)
    w2 = jax.random.normal(k_w2, (1, H), dtype=jnp.float32) * (1.0 / jnp.sqrt(H))
    b2 = jax.random.normal(k_b2, (1,), dtype=jnp.float32) * 0.01

    # TODO(synk): dropout is identity in eval mode; training-mode dropout masks
    # are not implemented in the kernel.

    params = prepare_value_head_params(w1, b1, w2, b2)   # one-time layout prep
    out = value_head_mlp_apply(hidden_states, params, max_value)
    out = jax.block_until_ready(out)

    ref_bf16 = reference_forward_bf16(hidden_states, w1, b1, w2, b2, max_value)
    ref_f32 = reference_forward(hidden_states, w1, b1, w2, b2, max_value)

    assert out.shape == (B, S), f"bad output shape {out.shape}"
    assert jnp.allclose(out, ref_bf16, atol=1e-3, rtol=1e-3), \
        "mismatch vs bf16-matched reference"
    assert jnp.allclose(out, ref_f32, atol=5e-2, rtol=5e-2), \
        "mismatch vs f32 reference (beyond expected bf16 quantization error)"

    print("KERNEL_OK")
</pallas_src>

<mosaic_0001>
module attributes {stable_mosaic.version = 11 : i64} {
  func.func @kernel(%arg0: i32, %arg1: i32, %arg2: memref<16x128xf32, #tpu.memory_space<vmem>>, %arg3: memref<128x128xbf16, #tpu.memory_space<vmem>>, %arg4: memref<1x128xf32, #tpu.memory_space<vmem>>, %arg5: memref<1x128xf32, #tpu.memory_space<vmem>>, %arg6: memref<1xf32, #tpu.memory_space<smem>>, %arg7: memref<16x1xf32, #tpu.memory_space<vmem>>, %arg8: memref<16x1xf32, #tpu.memory_space<vmem>>) attributes {dimension_semantics = [#tpu.dimension_semantics<parallel>, #tpu.dimension_semantics<arbitrary>], iteration_bounds = array<i64: 1, 1>, scalar_prefetch = 0 : i64, scratch_operands = 1 : i64, tpu.core_type = #tpu.core_type<tc>, window_params = [{transform_indices = @transform_0, window_bounds = array<i64: 16, 128>}, {pipeline_mode = #tpu.pipeline_mode<synchronous>, transform_indices = @transform_1, window_bounds = array<i64: 128, 128>}, {pipeline_mode = #tpu.pipeline_mode<synchronous>, transform_indices = @transform_2, window_bounds = array<i64: 1, 128>}, {pipeline_mode = #tpu.pipeline_mode<synchronous>, transform_indices = @transform_3, window_bounds = array<i64: 1, 128>}, {transform_indices = @transform_4, window_bounds = array<i64: 1>}, {transform_indices = @transform_5, window_bounds = array<i64: 16, 1>}]} {
    %c0_i32 = arith.constant 0 : i32
    %0 = arith.cmpi eq, %arg1, %c0_i32 : i32
    %1 = arith.extui %0 : i1 to i32
    %c0_i32_0 = arith.constant 0 : i32
    %2 = arith.cmpi ne, %1, %c0_i32_0 : i32
    scf.if %2 {
      %cst_16 = arith.constant 0.000000e+00 : f32
      %23 = vector.broadcast %cst_16 : f32 to vector<16x1xf32>
      %c0_17 = arith.constant 0 : index
      %c0_18 = arith.constant 0 : index
      %24 = vector.load %arg8[%c0_17, %c0_18] : memref<16x1xf32, #tpu.memory_space<vmem>>, vector<16x1xf32>
      tpu.vector_store %arg8[%c0_17, %c0_18], %23 {strides = array<i32>} : memref<16x1xf32, #tpu.memory_space<vmem>>, vector<16x1xf32>,
    } else {
    }
    %c0 = arith.constant 0 : index
    %c0_1 = arith.constant 0 : index
    %3 = vector.load %arg2[%c0, %c0_1] : memref<16x128xf32, #tpu.memory_space<vmem>>, vector<16x128xf32>
    %4 = arith.truncf %3 : vector<16x128xf32> to vector<16x128xbf16>
    %c0_2 = arith.constant 0 : index
    %c0_3 = arith.constant 0 : index
    %5 = vector.load %arg3[%c0_2, %c0_3] : memref<128x128xbf16, #tpu.memory_space<vmem>>, vector<128x128xbf16>
    %cst = arith.constant dense<0.000000e+00> : vector<16x128xf32>
    %6 = tpu.matmul %4, %5, %cst {dimension_numbers = #tpu.dot_dimension_numbers<[1], [0], [0], [1], [0, 0, 1, 1], [], []>} : vector<16x128xbf16>, vector<128x128xbf16>, vector<16x128xf32> -> vector<16x128xf32>
    %c0_4 = arith.constant 0 : index
    %c0_5 = arith.constant 0 : index
    %7 = vector.load %arg4[%c0_4, %c0_5] : memref<1x128xf32, #tpu.memory_space<vmem>>, vector<1x128xf32>
    %8 = vector.broadcast %7 : vector<1x128xf32> to vector<16x128xf32>
    %9 = arith.addf %6, %8 : vector<16x128xf32>
    %cst_6 = arith.constant 0.000000e+00 : f32
    %10 = vector.broadcast %cst_6 : f32 to vector<16x128xf32>
    %11 = arith.maximumf %9, %10 : vector<16x128xf32>
    %c0_7 = arith.constant 0 : index
    %c0_8 = arith.constant 0 : index
    %12 = vector.load %arg8[%c0_7, %c0_8] : memref<16x1xf32, #tpu.memory_space<vmem>>, vector<16x1xf32>
    %c0_9 = arith.constant 0 : index
    %c0_10 = arith.constant 0 : index
    %13 = vector.load %arg5[%c0_9, %c0_10] : memref<1x128xf32, #tpu.memory_space<vmem>>, vector<1x128xf32>
    %14 = vector.broadcast %13 : vector<1x128xf32> to vector<16x128xf32>
    %15 = arith.mulf %11, %14 : vector<16x128xf32>
    %cst_11 = arith.constant dense<0.000000e+00> : vector<16xf32>
    %16 = vector.multi_reduction <add>, %15, %cst_11 [1] : vector<16x128xf32> to vector<16xf32>
    %17 = vector.shape_cast %16 : vector<16xf32> to vector<16x1xf32>
    %18 = arith.addf %12, %17 : vector<16x1xf32>
    %c0_12 = arith.constant 0 : index
    %c0_13 = arith.constant 0 : index
    %19 = vector.load %arg8[%c0_12, %c0_13] : memref<16x1xf32, #tpu.memory_space<vmem>>, vector<16x1xf32>
    tpu.vector_store %arg8[%c0_12, %c0_13], %18 {strides = array<i32>} : memref<16x1xf32, #tpu.memory_space<vmem>>, vector<16x1xf32>,
    %c0_i32_14 = arith.constant 0 : i32
    %20 = arith.cmpi eq, %arg1, %c0_i32_14 : i32
    %21 = arith.extui %20 : i1 to i32
    %c0_i32_15 = arith.constant 0 : i32
    %22 = arith.cmpi ne, %21, %c0_i32_15 : i32
    scf.if %22 {
      %c0_16 = arith.constant 0 : index
      %c0_17 = arith.constant 0 : index
      %23 = vector.load %arg8[%c0_16, %c0_17] : memref<16x1xf32, #tpu.memory_space<vmem>>, vector<16x1xf32>
      %c0_18 = arith.constant 0 : index
      %24 = memref.load %arg6[%c0_18] : memref<1xf32, #tpu.memory_space<smem>>
      %25 = vector.broadcast %24 : f32 to vector<16x1xf32>
      %26 = arith.addf %23, %25 : vector<16x1xf32>
      %27 = arith.negf %26 : vector<16x1xf32>
      %28 = math.exp %27 : vector<16x1xf32>
      %cst_19 = arith.constant 1.000000e+00 : f32
      %29 = vector.broadcast %cst_19 : f32 to vector<16x1xf32>
      %30 = arith.addf %29, %28 : vector<16x1xf32>
      %31 = arith.divf %29, %30 : vector<16x1xf32>
      %cst_20 = arith.constant 5.000000e+00 : f32
      %32 = vector.broadcast %cst_20 : f32 to vector<16x1xf32>
      %33 = arith.mulf %31, %32 : vector<16x1xf32>
      %c0_21 = arith.constant 0 : index
      %c0_22 = arith.constant 0 : index
      %34 = vector.load %arg7[%c0_21, %c0_22] : memref<16x1xf32, #tpu.memory_space<vmem>>, vector<16x1xf32>
      tpu.vector_store %arg7[%c0_21, %c0_22], %33 {strides = array<i32>} : memref<16x1xf32, #tpu.memory_space<vmem>>, vector<16x1xf32>,
    } else {
    }
    return
  }
  func.func @transform_0(%arg0: i32, %arg1: i32) -> (i32, i32) {
    %c0_i32 = arith.constant 0 : i32
    %c0_i32_0 = arith.constant 0 : i32
    return %arg0, %c0_i32 : i32, i32
  }
  func.func @transform_1(%arg0: i32, %arg1: i32) -> (i32, i32) {
    %c0_i32 = arith.constant 0 : i32
    %c0_i32_0 = arith.constant 0 : i32
    return %c0_i32, %arg1 : i32, i32
  }
  func.func @transform_2(%arg0: i32, %arg1: i32) -> (i32, i32) {
    %c0_i32 = arith.constant 0 : i32
    %c0_i32_0 = arith.constant 0 : i32
    return %c0_i32, %arg1 : i32, i32
  }
  func.func @transform_3(%arg0: i32, %arg1: i32) -> (i32, i32) {
    %c0_i32 = arith.constant 0 : i32
    %c0_i32_0 = arith.constant 0 : i32
    return %c0_i32, %arg1 : i32, i32
  }
  func.func @transform_4(%arg0: i32, %arg1: i32) -> i32 {
    %c0_i32 = arith.constant 0 : i32
    %c0_i32_0 = arith.constant 0 : i32
    return %c0_i32 : i32
  }
  func.func @transform_5(%arg0: i32, %arg1: i32) -> (i32, i32) {
    %c0_i32 = arith.constant 0 : i32
    %c0_i32_0 = arith.constant 0 : i32
    return %arg0, %c0_i32 : i32, i32
  }
}

module attributes {stable_mosaic.version = 11 : i64} {
  func.func @kernel(%arg0: i32, %arg1: i32, %arg2: memref<16x128xf32, #tpu.memory_space<vmem>>, %arg3: memref<128x128xbf16, #tpu.memory_space<vmem>>, %arg4: memref<1x128xf32, #tpu.memory_space<vmem>>, %arg5: memref<1x128xf32, #tpu.memory_space<vmem>>, %arg6: memref<1xf32, #tpu.memory_space<smem>>, %arg7: memref<16x1xf32, #tpu.memory_space<vmem>>, %arg8: memref<16x1xf32, #tpu.memory_space<vmem>>) attributes {dimension_semantics = [#tpu.dimension_semantics<parallel>, #tpu.dimension_semantics<arbitrary>], iteration_bounds = array<i64: 1, 1>, scalar_prefetch = 0 : i64, scratch_operands = 1 : i64, tpu.core_type = #tpu.core_type<tc>, window_params = [{transform_indices = @transform_0, window_bounds = array<i64: 16, 128>}, {transform_indices = @transform_1, window_bounds = array<i64: 128, 128>}, {transform_indices = @transform_2, window_bounds = array<i64: 1, 128>}, {transform_indices = @transform_3, window_bounds = array<i64: 1, 128>}, {transform_indices = @transform_4, window_bounds = array<i64: 1>}, {transform_indices = @transform_5, window_bounds = array<i64: 16, 1>}]} {
    %c0_i32 = arith.constant 0 : i32
    %0 = arith.cmpi eq, %arg1, %c0_i32 : i32
    %1 = arith.extui %0 : i1 to i32
    %c0_i32_0 = arith.constant 0 : i32
    %2 = arith.cmpi ne, %1, %c0_i32_0 : i32
    scf.if %2 {
      %cst_16 = arith.constant 0.000000e+00 : f32
      %23 = vector.broadcast %cst_16 : f32 to vector<16x1xf32>
      %c0_17 = arith.constant 0 : index
      %c0_18 = arith.constant 0 : index
      %24 = vector.load %arg8[%c0_17, %c0_18] : memref<16x1xf32, #tpu.memory_space<vmem>>, vector<16x1xf32>
      tpu.vector_store %arg8[%c0_17, %c0_18], %23 {strides = array<i32>} : memref<16x1xf32, #tpu.memory_space<vmem>>, vector<16x1xf32>,
    } else {
    }
    %c0 = arith.constant 0 : index
    %c0_1 = arith.constant 0 : index
    %3 = vector.load %arg2[%c0, %c0_1] : memref<16x128xf32, #tpu.memory_space<vmem>>, vector<16x128xf32>
    %4 = arith.truncf %3 : vector<16x128xf32> to vector<16x128xbf16>
    %c0_2 = arith.constant 0 : index
    %c0_3 = arith.constant 0 : index
    %5 = vector.load %arg3[%c0_2, %c0_3] : memref<128x128xbf16, #tpu.memory_space<vmem>>, vector<128x128xbf16>
    %cst = arith.constant dense<0.000000e+00> : vector<16x128xf32>
    %6 = tpu.matmul %4, %5, %cst {dimension_numbers = #tpu.dot_dimension_numbers<[1], [0], [0], [1], [0, 0, 1, 1], [], []>} : vector<16x128xbf16>, vector<128x128xbf16>, vector<16x128xf32> -> vector<16x128xf32>
    %c0_4 = arith.constant 0 : index
    %c0_5 = arith.constant 0 : index
    %7 = vector.load %arg4[%c0_4, %c0_5] : memref<1x128xf32, #tpu.memory_space<vmem>>, vector<1x128xf32>
    %8 = vector.broadcast %7 : vector<1x128xf32> to vector<16x128xf32>
    %9 = arith.addf %6, %8 : vector<16x128xf32>
    %cst_6 = arith.constant 0.000000e+00 : f32
    %10 = vector.broadcast %cst_6 : f32 to vector<16x128xf32>
    %11 = arith.maximumf %9, %10 : vector<16x128xf32>
    %c0_7 = arith.constant 0 : index
    %c0_8 = arith.constant 0 : index
    %12 = vector.load %arg8[%c0_7, %c0_8] : memref<16x1xf32, #tpu.memory_space<vmem>>, vector<16x1xf32>
    %c0_9 = arith.constant 0 : index
    %c0_10 = arith.constant 0 : index
    %13 = vector.load %arg5[%c0_9, %c0_10] : memref<1x128xf32, #tpu.memory_space<vmem>>, vector<1x128xf32>
    %14 = vector.broadcast %13 : vector<1x128xf32> to vector<16x128xf32>
    %15 = arith.mulf %11, %14 : vector<16x128xf32>
    %cst_11 = arith.constant dense<0.000000e+00> : vector<16xf32>
    %16 = vector.multi_reduction <add>, %15, %cst_11 [1] : vector<16x128xf32> to vector<16xf32>
    %17 = vector.shape_cast %16 : vector<16xf32> to vector<16x1xf32>
    %18 = arith.addf %12, %17 : vector<16x1xf32>
    %c0_12 = arith.constant 0 : index
    %c0_13 = arith.constant 0 : index
    %19 = vector.load %arg8[%c0_12, %c0_13] : memref<16x1xf32, #tpu.memory_space<vmem>>, vector<16x1xf32>
    tpu.vector_store %arg8[%c0_12, %c0_13], %18 {strides = array<i32>} : memref<16x1xf32, #tpu.memory_space<vmem>>, vector<16x1xf32>,
    %c0_i32_14 = arith.constant 0 : i32
    %20 = arith.cmpi eq, %arg1, %c0_i32_14 : i32
    %21 = arith.extui %20 : i1 to i32
    %c0_i32_15 = arith.constant 0 : i32
    %22 = arith.cmpi ne, %21, %c0_i32_15 : i32
    scf.if %22 {
      %c0_16 = arith.constant 0 : index
      %c0_17 = arith.constant 0 : index
      %23 = vector.load %arg8[%c0_16, %c0_17] : memref<16x1xf32, #tpu.memory_space<vmem>>, vector<16x1xf32>
      %c0_18 = arith.constant 0 : index
      %24 = memref.load %arg6[%c0_18] : memref<1xf32, #tpu.memory_space<smem>>
      %25 = vector.broadcast %24 : f32 to vector<16x1xf32>
      %26 = arith.addf %23, %25 : vector<16x1xf32>
      %27 = arith.negf %26 : vector<16x1xf32>
      %28 = math.exp %27 : vector<16x1xf32>
      %cst_19 = arith.constant 1.000000e+00 : f32
      %29 = vector.broadcast %cst_19 : f32 to vector<16x1xf32>
      %30 = arith.addf %29, %28 : vector<16x1xf32>
      %31 = arith.divf %29, %30 : vector<16x1xf32>
      %cst_20 = arith.constant 5.000000e+00 : f32
      %32 = vector.broadcast %cst_20 : f32 to vector<16x1xf32>
      %33 = arith.mulf %31, %32 : vector<16x1xf32>
      %c0_21 = arith.constant 0 : index
      %c0_22 = arith.constant 0 : index
      %34 = vector.load %arg7[%c0_21, %c0_22] : memref<16x1xf32, #tpu.memory_space<vmem>>, vector<16x1xf32>
      tpu.vector_store %arg7[%c0_21, %c0_22], %33 {strides = array<i32>} : memref<16x1xf32, #tpu.memory_space<vmem>>, vector<16x1xf32>,
    } else {
    }
    return
  }
  func.func @transform_0(%arg0: i32, %arg1: i32) -> (i32, i32) {
    %c0_i32 = arith.constant 0 : i32
    %c0_i32_0 = arith.constant 0 : i32
    return %arg0, %c0_i32 : i32, i32
  }
  func.func @transform_1(%arg0: i32, %arg1: i32) -> (i32, i32) {
    %c0_i32 = arith.constant 0 : i32
    %c0_i32_0 = arith.constant 0 : i32
    return %c0_i32, %arg1 : i32, i32
  }
  func.func @transform_2(%arg0: i32, %arg1: i32) -> (i32, i32) {
    %c0_i32 = arith.constant 0 : i32
    %c0_i32_0 = arith.constant 0 : i32
    return %c0_i32, %arg1 : i32, i32
  }
  func.func @transform_3(%arg0: i32, %arg1: i32) -> (i32, i32) {
    %c0_i32 = arith.constant 0 : i32
    %c0_i32_0 = arith.constant 0 : i32
    return %c0_i32, %arg1 : i32, i32
  }
  func.func @transform_4(%arg0: i32, %arg1: i32) -> i32 {
    %c0_i32 = arith.constant 0 : i32
    %c0_i32_0 = arith.constant 0 : i32
    return %c0_i32 : i32
  }
  func.func @transform_5(%arg0: i32, %arg1: i32) -> (i32, i32) {
    %c0_i32 = arith.constant 0 : i32
    %c0_i32_0 = arith.constant 0 : i32
    return %arg0, %c0_i32 : i32, i32
  }
}

</mosaic_0001>

<llo_original>
// kernel: tpu_custom_call.1
$region0: #{tpu_custom_call.1}
  #allocation0 [shape = 'u32[]', space=smem, size = 0x4, offset = 0x4, fixed_abs, tag = 'smem constant byte address 0x4 - core index']
  #allocation1 [shape = 'u32[144,128]{1,0:T(1,128)}', space=vmem, size = 0x12000, scoped, tag = 'internal scratch']
  #allocation2 [shape = 'f32[16,1]{1,0:T(8,128)}', space=vmem, size = 0x2000, scoped, tag = 'scratch operand']
  #allocation3 [shape = 'f32[1]{0:T(128)S(6)}', space=smem, size = 0x200, scoped, tag = 'scoped memory for tpu_custom_call.1']
  %s0 = inlined_call_operand.hbm [shape: f32[16,128], index: 0, kind: input, shape index: {}]
  %s1 = inlined_call_operand.hbm [shape: bf16[128,128], index: 1, kind: input, shape index: {}]
  %s2 = inlined_call_operand.vmem [shape: f32[1,128], index: 2, kind: input, shape index: {}]
  %s3 = inlined_call_operand.vmem [shape: f32[1,128], index: 3, kind: input, shape index: {}]
  %s4 = inlined_call_operand.<no memory space> [shape: f32[1], index: 4, kind: input, shape index: {}]
  %s5 = inlined_call_operand.vmem [shape: f32[16,1], index: 5, kind: output, shape index: {}]
  %s6 = sld [smem:[#allocation0]]
  $region46: #{tpu_custom_call.1} parent=0
    _
  %s8 = ssub.s32 1, %s6
  %s9 = scalar_select 0, %s8, %s6
  %10 = sst [smem:[#allocation3]] %s4
  $region1: #{tpu_custom_call.1} parent=0
    #allocation4 [shape = 'u8[8192]{0}', space=vmem, size = 0x2000, scoped, tag = 'input window, operand 0, single buffered']
    #allocation5 [shape = 's32[1]{0}', space=sflag, size = 0x4, scoped, tag = 'scoped memory for tpu_custom_call.1']
    #allocation6 [shape = 'u8[32768]{0}', space=vmem, size = 0x8000, scoped, tag = 'input window, operand 1, single buffered']
    #allocation7 [shape = 's32[1]{0}', space=sflag, size = 0x4, scoped, tag = 'scoped memory for tpu_custom_call.1']
    %11 = vsyncpa [#allocation5], 0
    %12 = vsyncpa [#allocation7], 0
    // Predicated region
    $region2: #{tpu_custom_call.1} parent=1 // pred_check
      _
    $region3: #{tpu_custom_call.1} parent=1 // pred_check_branch
      %14 = sbr.rel (0) target = $region5
    $region4: #{tpu_custom_call.1} parent=1 // pred_region
      %s16 = ssub.s32 256, 256
      %17 = vsyncadd [#allocation5], %s16
      %s18 = sshll.u32 [#allocation4], 4
      %s19 = int_to_ptr.vmem [resolvable:$true] %s18
      %24 = dma.hbm_to_vmem [thread:$0]  %s0, 256, %s19, [#allocation5], 128, 128, 8
    $region5: #{tpu_custom_call.1} parent=1 // pred_fallthru
      _
    // Predicated region
    $region6: #{tpu_custom_call.1} parent=1 // pred_check
      _
    $region7: #{tpu_custom_call.1} parent=1 // pred_check_branch
      %26 = sbr.rel (0) target = $region9
    $region8: #{tpu_custom_call.1} parent=1 // pred_region
      %s28 = ssub.s32 1024, 1024
      %29 = vsyncadd [#allocation7], %s28
      %s30 = sshll.u32 [#allocation6], 4
      %s31 = int_to_ptr.vmem [resolvable:$true] %s30
      %36 = dma.hbm_to_vmem [thread:$0]  %s1, 1024, %s31, [#allocation7], 64, 64, 4
    $region9: #{tpu_custom_call.1} parent=1 // pred_fallthru
      _
    // Predicated region
    $region10: #{tpu_custom_call.1} parent=1 // pred_check
      _
    $region11: #{tpu_custom_call.1} parent=1 // pred_check_branch
      %38 = sbr.rel (0) target = $region13
    $region12: #{tpu_custom_call.1} parent=1 // pred_region
      _
    $region13: #{tpu_custom_call.1} parent=1 // pred_fallthru
      _
    // Predicated region
    $region14: #{tpu_custom_call.1} parent=1 // pred_check
      _
    $region15: #{tpu_custom_call.1} parent=1 // pred_check_branch
      %40 = sbr.rel (0) target = $region17
    $region16: #{tpu_custom_call.1} parent=1 // pred_region
      _
    $region17: #{tpu_custom_call.1} parent=1 // pred_fallthru
      _
    // Predicated region
    $region18: #{tpu_custom_call.1} parent=1 // pred_check
      _
    $region19: #{tpu_custom_call.1} parent=1 // pred_check_branch
      %42 = sbr.rel (0) target = $region21
    $region20: #{tpu_custom_call.1} parent=1 // pred_region
      _
    $region21: #{tpu_custom_call.1} parent=1 // pred_fallthru
      _
    // Predicated region
    $region22: #{tpu_custom_call.1} parent=1 // pred_check
      _
    $region23: #{tpu_custom_call.1} parent=1 // pred_check_branch
      %44 = sbr.rel (0) target = $region25
    $region24: #{tpu_custom_call.1} parent=1 // pred_region
      %45 = dma.done [#allocation5], 256
    $region25: #{tpu_custom_call.1} parent=1 // pred_fallthru
      _
    // Predicated region
    $region26: #{tpu_custom_call.1} parent=1 // pred_check
      _
    $region27: #{tpu_custom_call.1} parent=1 // pred_check_branch
      %47 = sbr.rel (0) target = $region29
    $region28: #{tpu_custom_call.1} parent=1 // pred_region
      %48 = dma.done [#allocation7], 1024
    $region29: #{tpu_custom_call.1} parent=1 // pred_fallthru
      _
    %p50 = scmp.eq.s32.totalorder 0, 0
    // Predicated region
    $region30: #{tpu_custom_call.1} parent=1 // pred_check
      %p51 = pneg %p50
    $region31: #{tpu_custom_call.1} parent=1 // pred_check_branch
      %53 = sbr.rel (%p51) target = $region33
    $region32: #{tpu_custom_call.1} parent=1 // pred_region
      %vm54 = vcmask 7168
      %55 = vst.msk [vmem:[#allocation2] sm:$0xff] %vm54, 0.0
      %56 = vst.msk [vmem:[#allocation2 + $0x8] sm:$0xff] %vm54, 0.0
    $region33: #{tpu_custom_call.1} parent=1 // pred_fallthru
      _
    %v57 = vld [vmem:[#allocation4] sm:$0xff]
    %v58 = vld [vmem:[#allocation4 + $0x8] sm:$0xff]
    %v59 = vpack.c.bf16 %v58, %v57
    %v60 = vld [vmem:[#allocation6] sm:$0xf]
    %v61 = vld [vmem:[#allocation6 + $0x4] sm:$0xf]
    %v62 = vld [vmem:[#allocation6 + $0x8] sm:$0xf]
    %v63 = vld [vmem:[#allocation6 + $0xc] sm:$0xf]
    %v64 = vld [vmem:[#allocation6 + $0x10] sm:$0xf]
    %v65 = vld [vmem:[#allocation6 + $0x14] sm:$0xf]
    %v66 = vld [vmem:[#allocation6 + $0x18] sm:$0xf]
    %v67 = vld [vmem:[#allocation6 + $0x1c] sm:$0xf]
    %v68 = vld [vmem:[#allocation6 + $0x20] sm:$0xf]
    %v69 = vld [vmem:[#allocation6 + $0x24] sm:$0xf]
    %v70 = vld [vmem:[#allocation6 + $0x28] sm:$0xf]
    %v71 = vld [vmem:[#allocation6 + $0x2c] sm:$0xf]
    %v72 = vld [vmem:[#allocation6 + $0x30] sm:$0xf]
    %v73 = vld [vmem:[#allocation6 + $0x34] sm:$0xf]
    %v74 = vld [vmem:[#allocation6 + $0x38] sm:$0xf]
    %v75 = vld [vmem:[#allocation6 + $0x3c] sm:$0xf]
    %v76 = vld [vmem:[%s2] sm:$0x1]
    %v78 = vlaneseq
    %v79 = vshrl.u32 %v78, 7
    %v80 = vsub.s32 0, %v79
    %v81 = vrot.slane %v76, %v80
    %v99 = vunpack.c.l.b16 %v60
    %v100 = vunpack.c.l.b16 %v61
    %v101 = vunpack.c.l.b16 %v62
    %v102 = vunpack.c.l.b16 %v63
    %v103 = vunpack.c.l.b16 %v64
    %v104 = vunpack.c.l.b16 %v65
    %v105 = vunpack.c.l.b16 %v66
    %v106 = vunpack.c.l.b16 %v67
    %v107 = vunpack.c.l.b16 %v68
    %v108 = vunpack.c.l.b16 %v69
    %v109 = vunpack.c.l.b16 %v70
    %v110 = vunpack.c.l.b16 %v71
    %v111 = vunpack.c.l.b16 %v72
    %v112 = vunpack.c.l.b16 %v73
    %v113 = vunpack.c.l.b16 %v74
    %v114 = vunpack.c.l.b16 %v75
    %v115 = vpack.c.b16 %v100, %v99
    %v116 = vpack.c.b16 %v102, %v101
    %v117 = vpack.c.b16 %v104, %v103
    %v118 = vpack.c.b16 %v106, %v105
    %v119 = vpack.c.b16 %v108, %v107
    %v120 = vpack.c.b16 %v110, %v109
    %v121 = vpack.c.b16 %v112, %v111
    %v122 = vpack.c.b16 %v114, %v113
    %131 = vmatprep.subr.bf16.mxu0 0
    %132 = vmatpush1.bf16.msra.mxu0 %v115
    %133 = vmatprep.subr.bf16.mxu0 0
    %134 = vmatpush1.bf16.msra.mxu0 %v116
    %135 = vmatprep.subr.bf16.mxu0 0
    %136 = vmatpush1.bf16.msra.mxu0 %v117
    %137 = vmatprep.subr.bf16.mxu0 0
    %138 = vmatpush1.bf16.msra.mxu0 %v118
    %139 = vmatprep.subr.bf16.mxu0 0
    %140 = vmatpush1.bf16.msra.mxu0 %v119
    %141 = vmatprep.subr.bf16.mxu0 0
    %142 = vmatpush1.bf16.msra.mxu0 %v120
    %143 = vmatprep.subr.bf16.mxu0 0
    %144 = vmatpush1.bf16.msra.mxu0 %v121
    %145 = vmatprep.subr.bf16.mxu0 0
    %146 = vmatpush1.bf16.msra.mxu0 %v122
    %147 = vmatprep.subr.bf16.mxu0 0
    %148 = vmatpush1.bf16.msra.mxu0 0
    %149 = vmatprep.subr.bf16.mxu0 0
    %150 = vmatpush1.bf16.msra.mxu0 0
    %151 = vmatprep.subr.bf16.mxu0 0
    %152 = vmatpush1.bf16.msra.mxu0 0
    %153 = vmatprep.subr.bf16.mxu0 0
    %154 = vmatpush1.bf16.msra.mxu0 0
    %155 = vmatprep.subr.bf16.mxu0 0
    %156 = vmatpush1.bf16.msra.mxu0 0
    %157 = vmatprep.subr.bf16.mxu0 0
    %158 = vmatpush1.bf16.msra.mxu0 0
    %159 = vmatprep.subr.bf16.mxu0 0
    %160 = vmatpush1.bf16.msra.mxu0 0
    %161 = vmatprep.subr.bf16.mxu0 0
    %162 = vmatpush1.bf16.msra.mxu0 0
    %163 = vmatprep.mubr.bf16.mxu0 0
    %164 = vmatmul.mubr.bf16.gmra.mrb[0].mxu0 %v59
    %v165 = vpop.f32.mrb[0].mxu0
    %v166 = vadd.f32 %v81, %v165
    %v167 = vpop.f32.mrb[0].mxu0
    %v168 = vpop.f32.mrb[0].mxu0
    %v169 = vadd.f32 %v81, %v168
    %v170 = vpop.f32.mrb[0].mxu0
    %171 = vdwg.mxu0
    %v172 = vmax.f32 %v166, 0.0
    %v173 = vmax.f32 %v169, 0.0
    %v174 = vld [vmem:[#allocation2] sm:$0xff]
    %v175 = vld [vmem:[#allocation2 + $0x8] sm:$0xff]
    %v176 = vld [vmem:[%s3] sm:$0x1]
    %v178 = vlaneseq
    %v179 = vshrl.u32 %v178, 7
    %v180 = vsub.s32 0, %v179
    %v181 = vrot.slane %v176, %v180
    %v183 = vmul.f32 %v172, %v181
    %v184 = vmul.f32 %v173, %v181
    %185 = vadd.xlane.f32.xlu0 %v183
    %v186 = vpop.xlane.xlu0 %185
    %187 = vadd.xlane.f32.xlu0 %v184
    %v188 = vpop.xlane.xlu0 %187
    %v189 = vadd.f32 %v174, %v186
    %v190 = vadd.f32 %v175, %v188
    %vm191 = vcmask 7168
    %192 = vst.msk [vmem:[#allocation2] sm:$0xff] %vm191, %v189
    %193 = vst.msk [vmem:[#allocation2 + $0x8] sm:$0xff] %vm191, %v190
    // Predicated region
    $region34: #{tpu_custom_call.1} parent=1 // pred_check
      %p194 = pneg %p50
    $region35: #{tpu_custom_call.1} parent=1 // pred_check_branch
      %196 = sbr.rel (%p194) target = $region37
    $region36: #{tpu_custom_call.1} parent=1 // pred_region
      %v197 = vld [vmem:[#allocation2] sm:$0xff]
      %v198 = vld [vmem:[#allocation2 + $0x8] sm:$0xff]
      %s199 = sld [smem:[#allocation3]]
      %v200 = vstv %s199
      %v201 = vadd.f32 %v197, %v200
      %v202 = vadd.f32 %v198, %v200
      %v203 = vxor.u32 %v201, 2147483648
      %v204 = vxor.u32 %v202, 2147483648
      %v205 = vmul.f32 %v203, 1.442695
      %v206 = vpow.pop %v205
      %v207 = vmul.f32 %v204, 1.442695
      %v208 = vpow.pop %v207
      %v209 = vadd.f32 %v206, 1.0
      %v210 = vadd.f32 %v208, 1.0
      %v211 = vrcp.pop %v209
      %v212 = vmul.f32 1.0, %v211
      %v213 = vrcp.pop %v210
      %v214 = vmul.f32 1.0, %v213
      %v215 = vmul.f32 %v212, 5.0
      %v216 = vmul.f32 %v214, 5.0
      %217 = vst.msk [vmem:[%s5] sm:$0xff] %vm191, %v215
      %218 = vst.msk [vmem:[%s5 + $0x8] sm:$0xff] %vm191, %v216
    $region37: #{tpu_custom_call.1} parent=1 // pred_fallthru
      _
    // Predicated region
    $region38: #{tpu_custom_call.1} parent=1 // pred_check
      _
    $region39: #{tpu_custom_call.1} parent=1 // pred_check_branch
      %220 = sbr.rel (0) target = $region41
    $region40: #{tpu_custom_call.1} parent=1 // pred_region
      _
    $region41: #{tpu_custom_call.1} parent=1 // pred_fallthru
      _
    // Predicated region
    $region42: #{tpu_custom_call.1} parent=1 // pred_check
      _
    $region43: #{tpu_custom_call.1} parent=1 // pred_check_branch
      %222 = sbr.rel (0) target = $region45
    $region44: #{tpu_custom_call.1} parent=1 // pred_region
      _
    $region45: #{tpu_custom_call.1} parent=1 // pred_fallthru
      _
    %223 = vsyncpa [#allocation5], 1
    %224 = vsyncpa [#allocation7], 1

// kernel: tpu_custom_call.1
$region0: #{tpu_custom_call.1}
  #allocation0 [shape = 'u32[]', space=smem, size = 0x4, offset = 0x4, fixed_abs, tag = 'smem constant byte address 0x4 - core index']
  #allocation1 [shape = 'u32[144,128]{1,0:T(1,128)}', space=vmem, size = 0x12000, scoped, tag = 'internal scratch']
  #allocation2 [shape = 'f32[16,1]{1,0:T(8,128)}', space=vmem, size = 0x2000, scoped, tag = 'scratch operand']
  #allocation3 [shape = 'f32[1]{0:T(128)S(6)}', space=smem, size = 0x200, scoped, tag = 'scoped memory for tpu_custom_call.1']
  %s0 = inlined_call_operand.hbm [shape: f32[16,128], index: 0, kind: input, shape index: {}]
  %s1 = inlined_call_operand.hbm [shape: bf16[128,128], index: 1, kind: input, shape index: {}]
  %s2 = inlined_call_operand.vmem [shape: f32[1,128], index: 2, kind: input, shape index: {}]
  %s3 = inlined_call_operand.vmem [shape: f32[1,128], index: 3, kind: input, shape index: {}]
  %s4 = inlined_call_operand.<no memory space> [shape: f32[1], index: 4, kind: input, shape index: {}]
  %s5 = inlined_call_operand.vmem [shape: f32[16,1], index: 5, kind: output, shape index: {}]
  %s6 = sld [smem:[#allocation0]]
  $region46: #{tpu_custom_call.1} parent=0
    _
  %s8 = ssub.s32 1, %s6
  %s9 = scalar_select 0, %s8, %s6
  %10 = sst [smem:[#allocation3]] %s4
  $region1: #{tpu_custom_call.1} parent=0
    #allocation4 [shape = 'u8[8192]{0}', space=vmem, size = 0x2000, scoped, tag = 'input window, operand 0, single buffered']
    #allocation5 [shape = 's32[1]{0}', space=sflag, size = 0x4, scoped, tag = 'scoped memory for tpu_custom_call.1']
    #allocation6 [shape = 'u8[32768]{0}', space=vmem, size = 0x8000, scoped, tag = 'input window, operand 1, single buffered']
    #allocation7 [shape = 's32[1]{0}', space=sflag, size = 0x4, scoped, tag = 'scoped memory for tpu_custom_call.1']
    %11 = vsyncpa [#allocation5], 0
    %12 = vsyncpa [#allocation7], 0
    // Predicated region
    $region2: #{tpu_custom_call.1} parent=1 // pred_check
      _
    $region3: #{tpu_custom_call.1} parent=1 // pred_check_branch
      %14 = sbr.rel (0) target = $region5
    $region4: #{tpu_custom_call.1} parent=1 // pred_region
      %s16 = ssub.s32 256, 256
      %17 = vsyncadd [#allocation5], %s16
      %s18 = sshll.u32 [#allocation4], 4
      %s19 = int_to_ptr.vmem [resolvable:$true] %s18
      %24 = dma.hbm_to_vmem [thread:$0]  %s0, 256, %s19, [#allocation5], 128, 128, 8
    $region5: #{tpu_custom_call.1} parent=1 // pred_fallthru
      _
    // Predicated region
    $region6: #{tpu_custom_call.1} parent=1 // pred_check
      _
    $region7: #{tpu_custom_call.1} parent=1 // pred_check_branch
      %26 = sbr.rel (0) target = $region9
    $region8: #{tpu_custom_call.1} parent=1 // pred_region
      %s28 = ssub.s32 1024, 1024
      %29 = vsyncadd [#allocation7], %s28
      %s30 = sshll.u32 [#allocation6], 4
      %s31 = int_to_ptr.vmem [resolvable:$true] %s30
      %36 = dma.hbm_to_vmem [thread:$0]  %s1, 1024, %s31, [#allocation7], 64, 64, 4
    $region9: #{tpu_custom_call.1} parent=1 // pred_fallthru
      _
    // Predicated region
    $region10: #{tpu_custom_call.1} parent=1 // pred_check
      _
    $region11: #{tpu_custom_call.1} parent=1 // pred_check_branch
      %38 = sbr.rel (0) target = $region13
    $region12: #{tpu_custom_call.1} parent=1 // pred_region
      _
    $region13: #{tpu_custom_call.1} parent=1 // pred_fallthru
      _
    // Predicated region
    $region14: #{tpu_custom_call.1} parent=1 // pred_check
      _
    $region15: #{tpu_custom_call.1} parent=1 // pred_check_branch
      %40 = sbr.rel (0) target = $region17
    $region16: #{tpu_custom_call.1} parent=1 // pred_region
      _
    $region17: #{tpu_custom_call.1} parent=1 // pred_fallthru
      _
    // Predicated region
    $region18: #{tpu_custom_call.1} parent=1 // pred_check
      _
    $region19: #{tpu_custom_call.1} parent=1 // pred_check_branch
      %42 = sbr.rel (0) target = $region21
    $region20: #{tpu_custom_call.1} parent=1 // pred_region
      _
    $region21: #{tpu_custom_call.1} parent=1 // pred_fallthru
      _
    // Predicated region
    $region22: #{tpu_custom_call.1} parent=1 // pred_check
      _
    $region23: #{tpu_custom_call.1} parent=1 // pred_check_branch
      %44 = sbr.rel (0) target = $region25
    $region24: #{tpu_custom_call.1} parent=1 // pred_region
      %45 = dma.done [#allocation5], 256
    $region25: #{tpu_custom_call.1} parent=1 // pred_fallthru
      _
    // Predicated region
    $region26: #{tpu_custom_call.1} parent=1 // pred_check
      _
    $region27: #{tpu_custom_call.1} parent=1 // pred_check_branch
      %47 = sbr.rel (0) target = $region29
    $region28: #{tpu_custom_call.1} parent=1 // pred_region
      %48 = dma.done [#allocation7], 1024
    $region29: #{tpu_custom_call.1} parent=1 // pred_fallthru
      _
    %p50 = scmp.eq.s32.totalorder 0, 0
    // Predicated region
    $region30: #{tpu_custom_call.1} parent=1 // pred_check
      %p51 = pneg %p50
    $region31: #{tpu_custom_call.1} parent=1 // pred_check_branch
      %53 = sbr.rel (%p51) target = $region33
    $region32: #{tpu_custom_call.1} parent=1 // pred_region
      %vm54 = vcmask 7168
      %55 = vst.msk [vmem:[#allocation2] sm:$0xff] %vm54, 0.0
      %56 = vst.msk [vmem:[#allocation2 + $0x8] sm:$0xff] %vm54, 0.0
    $region33: #{tpu_custom_call.1} parent=1 // pred_fallthru
      _
    %v57 = vld [vmem:[#allocation4] sm:$0xff]
    %v58 = vld [vmem:[#allocation4 + $0x8] sm:$0xff]
    %v59 = vpack.c.bf16 %v58, %v57
    %v60 = vld [vmem:[#allocation6] sm:$0xf]
    %v61 = vld [vmem:[#allocation6 + $0x4] sm:$0xf]
    %v62 = vld [vmem:[#allocation6 + $0x8] sm:$0xf]
    %v63 = vld [vmem:[#allocation6 + $0xc] sm:$0xf]
    %v64 = vld [vmem:[#allocation6 + $0x10] sm:$0xf]
    %v65 = vld [vmem:[#allocation6 + $0x14] sm:$0xf]
    %v66 = vld [vmem:[#allocation6 + $0x18] sm:$0xf]
    %v67 = vld [vmem:[#allocation6 + $0x1c] sm:$0xf]
    %v68 = vld [vmem:[#allocation6 + $0x20] sm:$0xf]
    %v69 = vld [vmem:[#allocation6 + $0x24] sm:$0xf]
    %v70 = vld [vmem:[#allocation6 + $0x28] sm:$0xf]
    %v71 = vld [vmem:[#allocation6 + $0x2c] sm:$0xf]
    %v72 = vld [vmem:[#allocation6 + $0x30] sm:$0xf]
    %v73 = vld [vmem:[#allocation6 + $0x34] sm:$0xf]
    %v74 = vld [vmem:[#allocation6 + $0x38] sm:$0xf]
    %v75 = vld [vmem:[#allocation6 + $0x3c] sm:$0xf]
    %v76 = vld [vmem:[%s2] sm:$0x1]
    %v78 = vlaneseq
    %v79 = vshrl.u32 %v78, 7
    %v80 = vsub.s32 0, %v79
    %v81 = vrot.slane %v76, %v80
    %v99 = vunpack.c.l.b16 %v60
    %v100 = vunpack.c.l.b16 %v61
    %v101 = vunpack.c.l.b16 %v62
    %v102 = vunpack.c.l.b16 %v63
    %v103 = vunpack.c.l.b16 %v64
    %v104 = vunpack.c.l.b16 %v65
    %v105 = vunpack.c.l.b16 %v66
    %v106 = vunpack.c.l.b16 %v67
    %v107 = vunpack.c.l.b16 %v68
    %v108 = vunpack.c.l.b16 %v69
    %v109 = vunpack.c.l.b16 %v70
    %v110 = vunpack.c.l.b16 %v71
    %v111 = vunpack.c.l.b16 %v72
    %v112 = vunpack.c.l.b16 %v73
    %v113 = vunpack.c.l.b16 %v74
    %v114 = vunpack.c.l.b16 %v75
    %v115 = vpack.c.b16 %v100, %v99
    %v116 = vpack.c.b16 %v102, %v101
    %v117 = vpack.c.b16 %v104, %v103
    %v118 = vpack.c.b16 %v106, %v105
    %v119 = vpack.c.b16 %v108, %v107
    %v120 = vpack.c.b16 %v110, %v109
    %v121 = vpack.c.b16 %v112, %v111
    %v122 = vpack.c.b16 %v114, %v113
    %131 = vmatprep.subr.bf16.mxu0 0
    %132 = vmatpush1.bf16.msra.mxu0 %v115
    %133 = vmatprep.subr.bf16.mxu0 0
    %134 = vmatpush1.bf16.msra.mxu0 %v116
    %135 = vmatprep.subr.bf16.mxu0 0
    %136 = vmatpush1.bf16.msra.mxu0 %v117
    %137 = vmatprep.subr.bf16.mxu0 0
    %138 = vmatpush1.bf16.msra.mxu0 %v118
    %139 = vmatprep.subr.bf16.mxu0 0
    %140 = vmatpush1.bf16.msra.mxu0 %v119
    %141 = vmatprep.subr.bf16.mxu0 0
    %142 = vmatpush1.bf16.msra.mxu0 %v120
    %143 = vmatprep.subr.bf16.mxu0 0
    %144 = vmatpush1.bf16.msra.mxu0 %v121
    %145 = vmatprep.subr.bf16.mxu0 0
    %146 = vmatpush1.bf16.msra.mxu0 %v122
    %147 = vmatprep.subr.bf16.mxu0 0
    %148 = vmatpush1.bf16.msra.mxu0 0
    %149 = vmatprep.subr.bf16.mxu0 0
    %150 = vmatpush1.bf16.msra.mxu0 0
    %151 = vmatprep.subr.bf16.mxu0 0
    %152 = vmatpush1.bf16.msra.mxu0 0
    %153 = vmatprep.subr.bf16.mxu0 0
    %154 = vmatpush1.bf16.msra.mxu0 0
    %155 = vmatprep.subr.bf16.mxu0 0
    %156 = vmatpush1.bf16.msra.mxu0 0
    %157 = vmatprep.subr.bf16.mxu0 0
    %158 = vmatpush1.bf16.msra.mxu0 0
    %159 = vmatprep.subr.bf16.mxu0 0
    %160 = vmatpush1.bf16.msra.mxu0 0
    %161 = vmatprep.subr.bf16.mxu0 0
    %162 = vmatpush1.bf16.msra.mxu0 0
    %163 = vmatprep.mubr.bf16.mxu0 0
    %164 = vmatmul.mubr.bf16.gmra.mrb[0].mxu0 %v59
    %v165 = vpop.f32.mrb[0].mxu0
    %v166 = vadd.f32 %v81, %v165
    %v167 = vpop.f32.mrb[0].mxu0
    %v168 = vpop.f32.mrb[0].mxu0
    %v169 = vadd.f32 %v81, %v168
    %v170 = vpop.f32.mrb[0].mxu0
    %171 = vdwg.mxu0
    %v172 = vmax.f32 %v166, 0.0
    %v173 = vmax.f32 %v169, 0.0
    %v174 = vld [vmem:[#allocation2] sm:$0xff]
    %v175 = vld [vmem:[#allocation2 + $0x8] sm:$0xff]
    %v176 = vld [vmem:[%s3] sm:$0x1]
    %v178 = vlaneseq
    %v179 = vshrl.u32 %v178, 7
    %v180 = vsub.s32 0, %v179
    %v181 = vrot.slane %v176, %v180
    %v183 = vmul.f32 %v172, %v181
    %v184 = vmul.f32 %v173, %v181
    %185 = vadd.xlane.f32.xlu0 %v183
    %v186 = vpop.xlane.xlu0 %185
    %187 = vadd.xlane.f32.xlu0 %v184
    %v188 = vpop.xlane.xlu0 %187
    %v189 = vadd.f32 %v174, %v186
    %v190 = vadd.f32 %v175, %v188
    %vm191 = vcmask 7168
    %192 = vst.msk [vmem:[#allocation2] sm:$0xff] %vm191, %v189
    %193 = vst.msk [vmem:[#allocation2 + $0x8] sm:$0xff] %vm191, %v190
    // Predicated region
    $region34: #{tpu_custom_call.1} parent=1 // pred_check
      %p194 = pneg %p50
    $region35: #{tpu_custom_call.1} parent=1 // pred_check_branch
      %196 = sbr.rel (%p194) target = $region37
    $region36: #{tpu_custom_call.1} parent=1 // pred_region
      %v197 = vld [vmem:[#allocation2] sm:$0xff]
      %v198 = vld [vmem:[#allocation2 + $0x8] sm:$0xff]
      %s199 = sld [smem:[#allocation3]]
      %v200 = vstv %s199
      %v201 = vadd.f32 %v197, %v200
      %v202 = vadd.f32 %v198, %v200
      %v203 = vxor.u32 %v201, 2147483648
      %v204 = vxor.u32 %v202, 2147483648
      %v205 = vmul.f32 %v203, 1.442695
      %v206 = vpow.pop %v205
      %v207 = vmul.f32 %v204, 1.442695
      %v208 = vpow.pop %v207
      %v209 = vadd.f32 %v206, 1.0
      %v210 = vadd.f32 %v208, 1.0
      %v211 = vrcp.pop %v209
      %v212 = vmul.f32 1.0, %v211
      %v213 = vrcp.pop %v210
      %v214 = vmul.f32 1.0, %v213
      %v215 = vmul.f32 %v212, 5.0
      %v216 = vmul.f32 %v214, 5.0
      %217 = vst.msk [vmem:[%s5] sm:$0xff] %vm191, %v215
      %218 = vst.msk [vmem:[%s5 + $0x8] sm:$0xff] %vm191, %v216
    $region37: #{tpu_custom_call.1} parent=1 // pred_fallthru
      _
    // Predicated region
    $region38: #{tpu_custom_call.1} parent=1 // pred_check
      _
    $region39: #{tpu_custom_call.1} parent=1 // pred_check_branch
      %220 = sbr.rel (0) target = $region41
    $region40: #{tpu_custom_call.1} parent=1 // pred_region
      _
    $region41: #{tpu_custom_call.1} parent=1 // pred_fallthru
      _
    // Predicated region
    $region42: #{tpu_custom_call.1} parent=1 // pred_check
      _
    $region43: #{tpu_custom_call.1} parent=1 // pred_check_branch
      %222 = sbr.rel (0) target = $region45
    $region44: #{tpu_custom_call.1} parent=1 // pred_region
      _
    $region45: #{tpu_custom_call.1} parent=1 // pred_fallthru
      _
    %223 = vsyncpa [#allocation5], 1
    %224 = vsyncpa [#allocation7], 1

</llo_original>
